<compile_context>
chip_gen: v6e
topology: v6e:2x2x1
jax: 0.10.0
libtpu: 0.0.40
codegen_flags: <defaults>
</compile_context>

<pallas_src>
import functools

import jax
import jax.numpy as jnp
from jax.experimental import pallas as pl
from jax.experimental.pallas import tpu as pltpu


def _round_up(n: int, m: int) -> int:
    return ((n + m - 1) // m) * m


_BLOCK_CAP = 1024  # max batch rows per grid step (sweepable; VMEM is not a limiter)


def _choose_block_b(batch: int) -> int:
    """Pick the batch tile: big (512-1024) blocks, but >= 2 grid steps when possible."""
    if batch < 16:
        # Single block equal to the full batch dim (allowed even if not 8-aligned).
        return batch
    # Aim for two (or more) grid steps so the "parallel" batch axis can be
    # sharded across v7x's two TensorCores; cap the block to amortize the
    # ~0.35us per-step overhead without overgrowing VMEM.
    return min(_BLOCK_CAP, _round_up(pl.cdiv(batch, 2), 8))


def _mlp_kernel(num_weights, in_dim, *refs):
    """refs = (x_ref, w0..w{n-1}, o_ref, xpad_scratch). ReLU after all but last dot."""
    x_ref = refs[0]
    w_refs = refs[1:1 + num_weights]
    o_ref = refs[1 + num_weights]
    xpad_ref = refs[2 + num_weights]          # (block_b, in_pad) bf16 scratch

    # Build the lane-padded bf16 input tile in VMEM: zero it (a few dozen vreg
    # stores) then masked-store the real in_dim lanes.  Zeroing every step
    # keeps the padding columns exact under megacore sharding of the parallel
    # batch axis (no reliance on a "first" grid step).
    xpad_ref[...] = jnp.zeros_like(xpad_ref)
    xpad_ref[:, :in_dim] = x_ref[...].astype(xpad_ref.dtype)

    # bf16 x bf16 -> f32 accumulate on the MXU; ReLU kept in f32 (free VPU filler).
    h = jnp.dot(xpad_ref[...], w_refs[0][...], preferred_element_type=jnp.float32)
    for w_ref in w_refs[1:]:
        h = jnp.maximum(h, 0.0)               # LinearBlock ReLU (not after final layer)
        h = jnp.dot(h.astype(jnp.bfloat16), w_ref[...],
                    preferred_element_type=jnp.float32)
    o_ref[...] = h.astype(o_ref.dtype)


def prepare_coin_agent_weights(weights):
    """One-time prep: PyTorch (out, in) f32 weights -> bf16 (in_pad, out_pad), (in,out)-layout.

    Zero padding keeps the math exact: padded input columns multiply zero weight
    rows and padded output columns stay identically zero through every layer.
    """
    prepared = []
    for w in weights:
        w = jnp.asarray(w, jnp.float32).T                       # (in, out)
        in_d, out_d = w.shape
        in_p, out_p = _round_up(in_d, 128), _round_up(out_d, 128)
        w = jnp.pad(w, ((0, in_p - in_d), (0, out_p - out_d)))
        prepared.append(w.astype(jnp.bfloat16))                 # MXU-native operand dtype
    return tuple(prepared)


def _forward_padded_out(x, weights_pad):
    """x: (batch, in_dim) f32 (natural last dim). Returns (batch, out_pad) f32."""
    num_w = len(weights_pad)
    batch, in_dim = x.shape
    in_pad = weights_pad[0].shape[0]
    out_pad = weights_pad[-1].shape[1]

    block_b = _choose_block_b(batch)
    grid = (pl.cdiv(batch, block_b),)         # ragged tail handled by Pallas

    kernel = functools.partial(_mlp_kernel, num_w, in_dim)

    # x keeps its natural (unpadded) last dim; block last dim == full array dim.
    x_spec = pl.BlockSpec((block_b, in_dim), lambda i: (i, 0))
    # Weights: constant index_map => resident in VMEM across all grid steps.
    w_specs = [pl.BlockSpec(w.shape, lambda i: (0, 0)) for w in weights_pad]
    # Output: lane-dense 128-wide last dim => unmasked vst.
    o_spec = pl.BlockSpec((block_b, out_pad), lambda i: (i, 0))

    return pl.pallas_call(
        kernel,
        out_shape=jax.ShapeDtypeStruct((batch, out_pad), jnp.float32),
        grid=grid,
        in_specs=[x_spec] + w_specs,
        out_specs=o_spec,
        scratch_shapes=[pltpu.VMEM((block_b, in_pad), jnp.bfloat16)],
        compiler_params=pltpu.CompilerParams(dimension_semantics=("parallel",)),
    )(x, *weights_pad)


@functools.partial(jax.jit, static_argnames=("out_dim",))
def coin_agent_forward(x, weights_pad, *, out_dim):
    """x: (batch, 2*num_coins+1). weights_pad: output of prepare_coin_agent_weights."""
    y_pad = _forward_padded_out(x.astype(jnp.float32), weights_pad)
    return y_pad[:, :out_dim]


def init_coin_agent_params(key, num_coins, num_layers, hidden_size=None):
    """Deterministic init matching the module's shapes (nn.Linear, bias=False), PyTorch (out,in) layout."""
    if hidden_size is None:
        hidden_size = 2 * num_coins + 1
    in_dim = 2 * num_coins + 1
    dims = [(hidden_size, in_dim)]                                   # input LinearBlock
    dims += [(hidden_size, hidden_size)] * (num_layers - 1)          # hidden LinearBlocks
    dims += [(num_coins, hidden_size)]                               # output Linear
    weights = []
    for i, (fan_out, fan_in) in enumerate(dims):
        k = jax.random.fold_in(key, i)
        bound = 1.0 / jnp.sqrt(jnp.float32(fan_in))
        w = jax.random.uniform(k, (fan_out, fan_in), jnp.float32, -bound, bound)
        weights.append(w)
    return weights


def coin_agent_reference(x, weights):
    """Pure-JAX f32 reference of the PyTorch forward for verification."""
    h = x
    for i, w in enumerate(weights):
        h = h @ w.T
        if i < len(weights) - 1:
            h = jnp.maximum(h, 0.0)
    return h


if __name__ == "__main__":
    num_coins = 4
    num_layers = 3
    hidden_size = 32
    batch = 8
    in_dim = 2 * num_coins + 1  # 9

    key = jax.random.PRNGKey(0)
    k_x, k_w = jax.random.split(key)
    x = jax.random.normal(k_x, (batch, in_dim), jnp.float32)
    weights = init_coin_agent_params(k_w, num_coins, num_layers, hidden_size)

    # One-time weight prep (transpose + pad + bf16 cast) outside the hot path.
    weights_pad = prepare_coin_agent_weights(weights)

    out = coin_agent_forward(x, weights_pad, out_dim=num_coins)
    out = jax.block_until_ready(out)

    ref = coin_agent_reference(x, weights)
    assert out.shape == (batch, num_coins)
    # bf16 MXU operands (f32 accumulation) => loosened tolerance vs the f32 reference.
    assert jnp.allclose(out, ref, atol=5e-2, rtol=5e-2), "Pallas output mismatch vs reference"

    print("KERNEL_OK")
</pallas_src>

<mosaic_0001>
module attributes {stable_mosaic.version = 11 : i64} {
  func.func @_mlp_kernel(%arg0: i32, %arg1: memref<8x9xf32, #tpu.memory_space<vmem>>, %arg2: memref<128x128xbf16, #tpu.memory_space<vmem>>, %arg3: memref<128x128xbf16, #tpu.memory_space<vmem>>, %arg4: memref<128x128xbf16, #tpu.memory_space<vmem>>, %arg5: memref<128x128xbf16, #tpu.memory_space<vmem>>, %arg6: memref<8x128xf32, #tpu.memory_space<vmem>>, %arg7: memref<8x128xbf16, #tpu.memory_space<vmem>>) attributes {dimension_semantics = [#tpu.dimension_semantics<parallel>], iteration_bounds = array<i64: 1>, scalar_prefetch = 0 : i64, scratch_operands = 1 : i64, tpu.core_type = #tpu.core_type<tc>, window_params = [{transform_indices = @transform_0, window_bounds = array<i64: 8, 9>}, {pipeline_mode = #tpu.pipeline_mode<synchronous>, transform_indices = @transform_1, window_bounds = array<i64: 128, 128>}, {pipeline_mode = #tpu.pipeline_mode<synchronous>, transform_indices = @transform_2, window_bounds = array<i64: 128, 128>}, {pipeline_mode = #tpu.pipeline_mode<synchronous>, transform_indices = @transform_3, window_bounds = array<i64: 128, 128>}, {pipeline_mode = #tpu.pipeline_mode<synchronous>, transform_indices = @transform_4, window_bounds = array<i64: 128, 128>}, {transform_indices = @transform_5, window_bounds = array<i64: 8, 128>}]} {
    %cst = arith.constant 0.000000e+00 : bf16
    %0 = vector.broadcast %cst : bf16 to vector<8x128xbf16>
    %c0 = arith.constant 0 : index
    %c0_0 = arith.constant 0 : index
    %1 = vector.load %arg7[%c0, %c0_0] : memref<8x128xbf16, #tpu.memory_space<vmem>>, vector<8x128xbf16>
    tpu.vector_store %arg7[%c0, %c0_0], %0 {strides = array<i32>} : memref<8x128xbf16, #tpu.memory_space<vmem>>, vector<8x128xbf16>,
    %c0_1 = arith.constant 0 : index
    %c0_2 = arith.constant 0 : index
    %2 = vector.load %arg1[%c0_1, %c0_2] : memref<8x9xf32, #tpu.memory_space<vmem>>, vector<8x9xf32>
    %3 = arith.truncf %2 : vector<8x9xf32> to vector<8x9xbf16>
    %c0_3 = arith.constant 0 : index
    %c0_4 = arith.constant 0 : index
    %4 = vector.load %arg7[%c0_3, %c0_4] : memref<8x128xbf16, #tpu.memory_space<vmem>>, vector<8x9xbf16>
    tpu.vector_store %arg7[%c0_3, %c0_4], %3 {strides = array<i32>} : memref<8x128xbf16, #tpu.memory_space<vmem>>, vector<8x9xbf16>,
    %c0_5 = arith.constant 0 : index
    %c0_6 = arith.constant 0 : index
    %5 = vector.load %arg7[%c0_5, %c0_6] : memref<8x128xbf16, #tpu.memory_space<vmem>>, vector<8x128xbf16>
    %c0_7 = arith.constant 0 : index
    %c0_8 = arith.constant 0 : index
    %6 = vector.load %arg2[%c0_7, %c0_8] : memref<128x128xbf16, #tpu.memory_space<vmem>>, vector<128x128xbf16>
    %cst_9 = arith.constant dense<0.000000e+00> : vector<8x128xf32>
    %7 = tpu.matmul %5, %6, %cst_9 {dimension_numbers = #tpu.dot_dimension_numbers<[1], [0], [0], [1], [0, 0, 1, 1], [], []>} : vector<8x128xbf16>, vector<128x128xbf16>, vector<8x128xf32> -> vector<8x128xf32>
    %cst_10 = arith.constant 0.000000e+00 : f32
    %8 = vector.broadcast %cst_10 : f32 to vector<8x128xf32>
    %9 = arith.maximumf %7, %8 : vector<8x128xf32>
    %10 = arith.truncf %9 : vector<8x128xf32> to vector<8x128xbf16>
    %c0_11 = arith.constant 0 : index
    %c0_12 = arith.constant 0 : index
    %11 = vector.load %arg3[%c0_11, %c0_12] : memref<128x128xbf16, #tpu.memory_space<vmem>>, vector<128x128xbf16>
    %cst_13 = arith.constant dense<0.000000e+00> : vector<8x128xf32>
    %12 = tpu.matmul %10, %11, %cst_13 {dimension_numbers = #tpu.dot_dimension_numbers<[1], [0], [0], [1], [0, 0, 1, 1], [], []>} : vector<8x128xbf16>, vector<128x128xbf16>, vector<8x128xf32> -> vector<8x128xf32>
    %cst_14 = arith.constant 0.000000e+00 : f32
    %13 = vector.broadcast %cst_14 : f32 to vector<8x128xf32>
    %14 = arith.maximumf %12, %13 : vector<8x128xf32>
    %15 = arith.truncf %14 : vector<8x128xf32> to vector<8x128xbf16>
    %c0_15 = arith.constant 0 : index
    %c0_16 = arith.constant 0 : index
    %16 = vector.load %arg4[%c0_15, %c0_16] : memref<128x128xbf16, #tpu.memory_space<vmem>>, vector<128x128xbf16>
    %cst_17 = arith.constant dense<0.000000e+00> : vector<8x128xf32>
    %17 = tpu.matmul %15, %16, %cst_17 {dimension_numbers = #tpu.dot_dimension_numbers<[1], [0], [0], [1], [0, 0, 1, 1], [], []>} : vector<8x128xbf16>, vector<128x128xbf16>, vector<8x128xf32> -> vector<8x128xf32>
    %cst_18 = arith.constant 0.000000e+00 : f32
    %18 = vector.broadcast %cst_18 : f32 to vector<8x128xf32>
    %19 = arith.maximumf %17, %18 : vector<8x128xf32>
    %20 = arith.truncf %19 : vector<8x128xf32> to vector<8x128xbf16>
    %c0_19 = arith.constant 0 : index
    %c0_20 = arith.constant 0 : index
    %21 = vector.load %arg5[%c0_19, %c0_20] : memref<128x128xbf16, #tpu.memory_space<vmem>>, vector<128x128xbf16>
    %cst_21 = arith.constant dense<0.000000e+00> : vector<8x128xf32>
    %22 = tpu.matmul %20, %21, %cst_21 {dimension_numbers = #tpu.dot_dimension_numbers<[1], [0], [0], [1], [0, 0, 1, 1], [], []>} : vector<8x128xbf16>, vector<128x128xbf16>, vector<8x128xf32> -> vector<8x128xf32>
    %c0_22 = arith.constant 0 : index
    %c0_23 = arith.constant 0 : index
    %23 = vector.load %arg6[%c0_22, %c0_23] : memref<8x128xf32, #tpu.memory_space<vmem>>, vector<8x128xf32>
    tpu.vector_store %arg6[%c0_22, %c0_23], %22 {strides = array<i32>} : memref<8x128xf32, #tpu.memory_space<vmem>>, vector<8x128xf32>,
    return
  }
  func.func @transform_0(%arg0: i32) -> (i32, i32) {
    %c0_i32 = arith.constant 0 : i32
    %c0_i32_0 = arith.constant 0 : i32
    return %arg0, %c0_i32 : i32, i32
  }
  func.func @transform_1(%arg0: i32) -> (i32, i32) {
    %c0_i32 = arith.constant 0 : i32
    %c0_i32_0 = arith.constant 0 : i32
    %c0_i32_1 = arith.constant 0 : i32
    return %c0_i32, %c0_i32_0 : i32, i32
  }
  func.func @transform_2(%arg0: i32) -> (i32, i32) {
    %c0_i32 = arith.constant 0 : i32
    %c0_i32_0 = arith.constant 0 : i32
    %c0_i32_1 = arith.constant 0 : i32
    return %c0_i32, %c0_i32_0 : i32, i32
  }
  func.func @transform_3(%arg0: i32) -> (i32, i32) {
    %c0_i32 = arith.constant 0 : i32
    %c0_i32_0 = arith.constant 0 : i32
    %c0_i32_1 = arith.constant 0 : i32
    return %c0_i32, %c0_i32_0 : i32, i32
  }
  func.func @transform_4(%arg0: i32) -> (i32, i32) {
    %c0_i32 = arith.constant 0 : i32
    %c0_i32_0 = arith.constant 0 : i32
    %c0_i32_1 = arith.constant 0 : i32
    return %c0_i32, %c0_i32_0 : i32, i32
  }
  func.func @transform_5(%arg0: i32) -> (i32, i32) {
    %c0_i32 = arith.constant 0 : i32
    %c0_i32_0 = arith.constant 0 : i32
    return %arg0, %c0_i32 : i32, i32
  }
}

</mosaic_0001>

<llo_original>
// kernel: coin_agent_forward.1
$region0: #{coin_agent_forward.1}
  #allocation0 [shape = 'u32[]', space=smem, size = 0x4, offset = 0x4, fixed_abs, tag = 'smem constant byte address 0x4 - core index']
  #allocation1 [shape = 'u32[144,128]{1,0:T(1,128)}', space=vmem, size = 0x12000, scoped, tag = 'internal scratch']
  #allocation2 [shape = 'bf16[8,128]{1,0:T(8,128)(2,1)}', space=vmem, size = 0x800, scoped, tag = 'scratch operand']
  %s0 = inlined_call_operand.hbm [shape: f32[8,9], index: 0, kind: input, shape index: {}]
  %s1 = inlined_call_operand.hbm [shape: bf16[128,128], index: 1, kind: input, shape index: {}]
  %s2 = inlined_call_operand.hbm [shape: bf16[128,128], index: 2, kind: input, shape index: {}]
  %s3 = inlined_call_operand.hbm [shape: bf16[128,128], index: 3, kind: input, shape index: {}]
  %s4 = inlined_call_operand.hbm [shape: bf16[128,128], index: 4, kind: input, shape index: {}]
  %s5 = inlined_call_operand.vmem [shape: f32[8,128], index: 5, kind: output, shape index: {}]
  %s6 = sld [smem:[#allocation0]]
  $region50: #{coin_agent_forward.1} parent=0
    _
  %s8 = ssub.s32 1, %s6
  %s9 = scalar_select 0, %s8, %s6
  $region1: #{coin_agent_forward.1} parent=0
    #allocation3 [shape = 'u8[4096]{0}', space=vmem, size = 0x1000, scoped, tag = 'input window, operand 0, single buffered']
    #allocation4 [shape = 's32[1]{0}', space=sflag, size = 0x4, scoped, tag = 'scoped memory for coin_agent_forward.1']
    #allocation5 [shape = 'u8[32768]{0}', space=vmem, size = 0x8000, scoped, tag = 'input window, operand 1, single buffered']
    #allocation6 [shape = 's32[1]{0}', space=sflag, size = 0x4, scoped, tag = 'scoped memory for coin_agent_forward.1']
    #allocation7 [shape = 'u8[32768]{0}', space=vmem, size = 0x8000, scoped, tag = 'input window, operand 2, single buffered']
    #allocation8 [shape = 'u8[32768]{0}', space=vmem, size = 0x8000, scoped, tag = 'input window, operand 3, single buffered']
    #allocation9 [shape = 's32[1]{0}', space=sflag, size = 0x4, scoped, tag = 'scoped memory for coin_agent_forward.1']
    #allocation10 [shape = 'u8[32768]{0}', space=vmem, size = 0x8000, scoped, tag = 'input window, operand 4, single buffered']
    %10 = vsyncpa [#allocation4], 0
    %11 = vsyncpa [#allocation6], 0
    %12 = vsyncpa [#allocation9], 0
    // Predicated region
    $region2: #{coin_agent_forward.1} parent=1 // pred_check
      _
    $region3: #{coin_agent_forward.1} parent=1 // pred_check_branch
      %14 = sbr.rel (0) target = $region5
    $region4: #{coin_agent_forward.1} parent=1 // pred_region
      %s16 = ssub.s32 128, 128
      %17 = vsyncadd [#allocation4], %s16
      %s19 = sshll.u32 [#allocation3], 4
      %s20 = int_to_ptr.vmem [resolvable:$true] %s19
      %22 = dma.hbm_to_vmem [thread:$0]  %s0, 128, %s20, [#allocation4]
    $region5: #{coin_agent_forward.1} parent=1 // pred_fallthru
      _
    // Predicated region
    $region6: #{coin_agent_forward.1} parent=1 // pred_check
      _
    $region7: #{coin_agent_forward.1} parent=1 // pred_check_branch
      %24 = sbr.rel (0) target = $region9
    $region8: #{coin_agent_forward.1} parent=1 // pred_region
      %s26 = ssub.s32 1024, 1024
      %27 = vsyncadd [#allocation6], %s26
      %s28 = sshll.u32 [#allocation5], 4
      %s29 = int_to_ptr.vmem [resolvable:$true] %s28
      %34 = dma.hbm_to_vmem [thread:$0]  %s1, 1024, %s29, [#allocation6], 64, 64, 4
    $region9: #{coin_agent_forward.1} parent=1 // pred_fallthru
      _
    // Predicated region
    $region10: #{coin_agent_forward.1} parent=1 // pred_check
      _
    $region11: #{coin_agent_forward.1} parent=1 // pred_check_branch
      %36 = sbr.rel (0) target = $region13
    $region12: #{coin_agent_forward.1} parent=1 // pred_region
      %s38 = ssub.s32 1024, 1024
      %39 = vsyncadd [#allocation6], %s38
      %s40 = sshll.u32 [#allocation7], 4
      %s41 = int_to_ptr.vmem [resolvable:$true] %s40
      %46 = dma.hbm_to_vmem [thread:$0]  %s2, 1024, %s41, [#allocation6], 64, 64, 4
    $region13: #{coin_agent_forward.1} parent=1 // pred_fallthru
      _
    // Predicated region
    $region14: #{coin_agent_forward.1} parent=1 // pred_check
      _
    $region15: #{coin_agent_forward.1} parent=1 // pred_check_branch
      %48 = sbr.rel (0) target = $region17
    $region16: #{coin_agent_forward.1} parent=1 // pred_region
      %s50 = ssub.s32 1024, 1024
      %51 = vsyncadd [#allocation9], %s50
      %s52 = sshll.u32 [#allocation8], 4
      %s53 = int_to_ptr.vmem [resolvable:$true] %s52
      %58 = dma.hbm_to_vmem [thread:$0]  %s3, 1024, %s53, [#allocation9], 64, 64, 4
    $region17: #{coin_agent_forward.1} parent=1 // pred_fallthru
      _
    // Predicated region
    $region18: #{coin_agent_forward.1} parent=1 // pred_check
      _
    $region19: #{coin_agent_forward.1} parent=1 // pred_check_branch
      %60 = sbr.rel (0) target = $region21
    $region20: #{coin_agent_forward.1} parent=1 // pred_region
      %s62 = ssub.s32 1024, 1024
      %63 = vsyncadd [#allocation9], %s62
      %s64 = sshll.u32 [#allocation10], 4
      %s65 = int_to_ptr.vmem [resolvable:$true] %s64
      %70 = dma.hbm_to_vmem [thread:$0]  %s4, 1024, %s65, [#allocation9], 64, 64, 4
    $region21: #{coin_agent_forward.1} parent=1 // pred_fallthru
      _
    // Predicated region
    $region22: #{coin_agent_forward.1} parent=1 // pred_check
      _
    $region23: #{coin_agent_forward.1} parent=1 // pred_check_branch
      %72 = sbr.rel (0) target = $region25
    $region24: #{coin_agent_forward.1} parent=1 // pred_region
      %73 = dma.done [#allocation4], 128
    $region25: #{coin_agent_forward.1} parent=1 // pred_fallthru
      _
    // Predicated region
    $region26: #{coin_agent_forward.1} parent=1 // pred_check
      _
    $region27: #{coin_agent_forward.1} parent=1 // pred_check_branch
      %75 = sbr.rel (0) target = $region29
    $region28: #{coin_agent_forward.1} parent=1 // pred_region
      %76 = dma.done [#allocation6], 1024
    $region29: #{coin_agent_forward.1} parent=1 // pred_fallthru
      _
    // Predicated region
    $region30: #{coin_agent_forward.1} parent=1 // pred_check
      _
    $region31: #{coin_agent_forward.1} parent=1 // pred_check_branch
      %78 = sbr.rel (0) target = $region33
    $region32: #{coin_agent_forward.1} parent=1 // pred_region
      %79 = dma.done [#allocation6], 1024
    $region33: #{coin_agent_forward.1} parent=1 // pred_fallthru
      _
    // Predicated region
    $region34: #{coin_agent_forward.1} parent=1 // pred_check
      _
    $region35: #{coin_agent_forward.1} parent=1 // pred_check_branch
      %81 = sbr.rel (0) target = $region37
    $region36: #{coin_agent_forward.1} parent=1 // pred_region
      %82 = dma.done [#allocation9], 1024
    $region37: #{coin_agent_forward.1} parent=1 // pred_fallthru
      _
    // Predicated region
    $region38: #{coin_agent_forward.1} parent=1 // pred_check
      _
    $region39: #{coin_agent_forward.1} parent=1 // pred_check_branch
      %84 = sbr.rel (0) target = $region41
    $region40: #{coin_agent_forward.1} parent=1 // pred_region
      %85 = dma.done [#allocation9], 1024
    $region41: #{coin_agent_forward.1} parent=1 // pred_fallthru
      _
    %87 = vst [vmem:[#allocation2] sm:$0xf] 0
    %v88 = vld [vmem:[#allocation3] sm:$0xff]
    %v89 = vpack.c.bf16 %v88, %v88
    %vm90 = vcmask 68608
    %91 = vst.msk [vmem:[#allocation2] sm:$0xf] %vm90, %v89
    %v92 = vld [vmem:[#allocation2] sm:$0xf]
    %v93 = vld [vmem:[#allocation5] sm:$0xf]
    %v94 = vld [vmem:[#allocation5 + $0x4] sm:$0xf]
    %v95 = vld [vmem:[#allocation5 + $0x8] sm:$0xf]
    %v96 = vld [vmem:[#allocation5 + $0xc] sm:$0xf]
    %v97 = vld [vmem:[#allocation5 + $0x10] sm:$0xf]
    %v98 = vld [vmem:[#allocation5 + $0x14] sm:$0xf]
    %v99 = vld [vmem:[#allocation5 + $0x18] sm:$0xf]
    %v100 = vld [vmem:[#allocation5 + $0x1c] sm:$0xf]
    %v101 = vld [vmem:[#allocation5 + $0x20] sm:$0xf]
    %v102 = vld [vmem:[#allocation5 + $0x24] sm:$0xf]
    %v103 = vld [vmem:[#allocation5 + $0x28] sm:$0xf]
    %v104 = vld [vmem:[#allocation5 + $0x2c] sm:$0xf]
    %v105 = vld [vmem:[#allocation5 + $0x30] sm:$0xf]
    %v106 = vld [vmem:[#allocation5 + $0x34] sm:$0xf]
    %v107 = vld [vmem:[#allocation5 + $0x38] sm:$0xf]
    %v108 = vld [vmem:[#allocation5 + $0x3c] sm:$0xf]
    %v125 = vunpack.c.l.b16 %v93
    %v126 = vunpack.c.l.b16 %v94
    %v127 = vunpack.c.l.b16 %v95
    %v128 = vunpack.c.l.b16 %v96
    %v129 = vunpack.c.l.b16 %v97
    %v130 = vunpack.c.l.b16 %v98
    %v131 = vunpack.c.l.b16 %v99
    %v132 = vunpack.c.l.b16 %v100
    %v133 = vunpack.c.l.b16 %v101
    %v134 = vunpack.c.l.b16 %v102
    %v135 = vunpack.c.l.b16 %v103
    %v136 = vunpack.c.l.b16 %v104
    %v137 = vunpack.c.l.b16 %v105
    %v138 = vunpack.c.l.b16 %v106
    %v139 = vunpack.c.l.b16 %v107
    %v140 = vunpack.c.l.b16 %v108
    %v141 = vpack.c.b16 %v126, %v125
    %v142 = vpack.c.b16 %v128, %v127
    %v143 = vpack.c.b16 %v130, %v129
    %v144 = vpack.c.b16 %v132, %v131
    %v145 = vpack.c.b16 %v134, %v133
    %v146 = vpack.c.b16 %v136, %v135
    %v147 = vpack.c.b16 %v138, %v137
    %v148 = vpack.c.b16 %v140, %v139
    %157 = vmatprep.subr.bf16.mxu0 0
    %158 = vmatpush1.bf16.msra.mxu0 %v148
    %159 = vmatprep.subr.bf16.mxu0 0
    %160 = vmatpush1.bf16.msra.mxu0 %v147
    %161 = vmatprep.subr.bf16.mxu0 0
    %162 = vmatpush1.bf16.msra.mxu0 %v146
    %163 = vmatprep.subr.bf16.mxu0 0
    %164 = vmatpush1.bf16.msra.mxu0 %v145
    %165 = vmatprep.subr.bf16.mxu0 0
    %166 = vmatpush1.bf16.msra.mxu0 %v144
    %167 = vmatprep.subr.bf16.mxu0 0
    %168 = vmatpush1.bf16.msra.mxu0 %v143
    %169 = vmatprep.subr.bf16.mxu0 0
    %170 = vmatpush1.bf16.msra.mxu0 %v142
    %171 = vmatprep.subr.bf16.mxu0 0
    %172 = vmatpush1.bf16.msra.mxu0 %v141
    %173 = vmatprep.subr.bf16.mxu0 0
    %174 = vmatpush2.bf16.msra.mxu0 0
    %175 = vmatprep.subr.bf16.mxu0 0
    %176 = vmatpush2.bf16.msra.mxu0 0
    %177 = vmatprep.subr.bf16.mxu0 0
    %178 = vmatpush2.bf16.msra.mxu0 0
    %179 = vmatprep.subr.bf16.mxu0 0
    %180 = vmatpush2.bf16.msra.mxu0 0
    %181 = vmatprep.subr.bf16.mxu0 0
    %182 = vmatpush2.bf16.msra.mxu0 0
    %183 = vmatprep.subr.bf16.mxu0 0
    %184 = vmatpush2.bf16.msra.mxu0 0
    %185 = vmatprep.subr.bf16.mxu0 0
    %186 = vmatpush2.bf16.msra.mxu0 0
    %187 = vmatprep.subr.bf16.mxu0 0
    %188 = vmatpush2.bf16.msra.mxu0 0
    %189 = vmatprep.mubr.bf16.mxu0 0
    %190 = vmatmul.mubr.bf16.gmra.mxu0 %v92
    %v191 = vpop.f32.mrf.mxu0
    %v192 = vadd.f32 0.0, %v191
    %v193 = vpop.f32.mrf.mxu0
    %v194 = vpop.f32.mrf.mxu0
    %v195 = vpop.f32.mrf.mxu0
    %196 = vdwg.mxu0
    %v197 = vmax.f32 %v192, 0.0
    %v198 = vpack.c.bf16 %v197, %v197
    %v199 = vld [vmem:[#allocation7] sm:$0xf]
    %v200 = vld [vmem:[#allocation7 + $0x4] sm:$0xf]
    %v201 = vld [vmem:[#allocation7 + $0x8] sm:$0xf]
    %v202 = vld [vmem:[#allocation7 + $0xc] sm:$0xf]
    %v203 = vld [vmem:[#allocation7 + $0x10] sm:$0xf]
    %v204 = vld [vmem:[#allocation7 + $0x14] sm:$0xf]
    %v205 = vld [vmem:[#allocation7 + $0x18] sm:$0xf]
    %v206 = vld [vmem:[#allocation7 + $0x1c] sm:$0xf]
    %v207 = vld [vmem:[#allocation7 + $0x20] sm:$0xf]
    %v208 = vld [vmem:[#allocation7 + $0x24] sm:$0xf]
    %v209 = vld [vmem:[#allocation7 + $0x28] sm:$0xf]
    %v210 = vld [vmem:[#allocation7 + $0x2c] sm:$0xf]
    %v211 = vld [vmem:[#allocation7 + $0x30] sm:$0xf]
    %v212 = vld [vmem:[#allocation7 + $0x34] sm:$0xf]
    %v213 = vld [vmem:[#allocation7 + $0x38] sm:$0xf]
    %v214 = vld [vmem:[#allocation7 + $0x3c] sm:$0xf]
    %v231 = vunpack.c.l.b16 %v199
    %v232 = vunpack.c.l.b16 %v200
    %v233 = vunpack.c.l.b16 %v201
    %v234 = vunpack.c.l.b16 %v202
    %v235 = vunpack.c.l.b16 %v203
    %v236 = vunpack.c.l.b16 %v204
    %v237 = vunpack.c.l.b16 %v205
    %v238 = vunpack.c.l.b16 %v206
    %v239 = vunpack.c.l.b16 %v207
    %v240 = vunpack.c.l.b16 %v208
    %v241 = vunpack.c.l.b16 %v209
    %v242 = vunpack.c.l.b16 %v210
    %v243 = vunpack.c.l.b16 %v211
    %v244 = vunpack.c.l.b16 %v212
    %v245 = vunpack.c.l.b16 %v213
    %v246 = vunpack.c.l.b16 %v214
    %v247 = vpack.c.b16 %v232, %v231
    %v248 = vpack.c.b16 %v234, %v233
    %v249 = vpack.c.b16 %v236, %v235
    %v250 = vpack.c.b16 %v238, %v237
    %v251 = vpack.c.b16 %v240, %v239
    %v252 = vpack.c.b16 %v242, %v241
    %v253 = vpack.c.b16 %v244, %v243
    %v254 = vpack.c.b16 %v246, %v245
    %263 = vmatprep.subr.bf16.mxu0 0
    %264 = vmatpush1.bf16.msra.mxu0 %v254
    %265 = vmatprep.subr.bf16.mxu0 0
    %266 = vmatpush1.bf16.msra.mxu0 %v253
    %267 = vmatprep.subr.bf16.mxu0 0
    %268 = vmatpush1.bf16.msra.mxu0 %v252
    %269 = vmatprep.subr.bf16.mxu0 0
    %270 = vmatpush1.bf16.msra.mxu0 %v251
    %271 = vmatprep.subr.bf16.mxu0 0
    %272 = vmatpush1.bf16.msra.mxu0 %v250
    %273 = vmatprep.subr.bf16.mxu0 0
    %274 = vmatpush1.bf16.msra.mxu0 %v249
    %275 = vmatprep.subr.bf16.mxu0 0
    %276 = vmatpush1.bf16.msra.mxu0 %v248
    %277 = vmatprep.subr.bf16.mxu0 0
    %278 = vmatpush1.bf16.msra.mxu0 %v247
    %279 = vmatprep.subr.bf16.mxu0 0
    %280 = vmatpush2.bf16.msra.mxu0 0
    %281 = vmatprep.subr.bf16.mxu0 0
    %282 = vmatpush2.bf16.msra.mxu0 0
    %283 = vmatprep.subr.bf16.mxu0 0
    %284 = vmatpush2.bf16.msra.mxu0 0
    %285 = vmatprep.subr.bf16.mxu0 0
    %286 = vmatpush2.bf16.msra.mxu0 0
    %287 = vmatprep.subr.bf16.mxu0 0
    %288 = vmatpush2.bf16.msra.mxu0 0
    %289 = vmatprep.subr.bf16.mxu0 0
    %290 = vmatpush2.bf16.msra.mxu0 0
    %291 = vmatprep.subr.bf16.mxu0 0
    %292 = vmatpush2.bf16.msra.mxu0 0
    %293 = vmatprep.subr.bf16.mxu0 0
    %294 = vmatpush2.bf16.msra.mxu0 0
    %295 = vmatprep.mubr.bf16.mxu0 0
    %296 = vmatmul.mubr.bf16.gmra.mxu0 %v198
    %v297 = vpop.f32.mrf.mxu0
    %v298 = vadd.f32 0.0, %v297
    %v299 = vpop.f32.mrf.mxu0
    %v300 = vpop.f32.mrf.mxu0
    %v301 = vpop.f32.mrf.mxu0
    %302 = vdwg.mxu0
    %v303 = vmax.f32 %v298, 0.0
    %v304 = vpack.c.bf16 %v303, %v303
    %v305 = vld [vmem:[#allocation8] sm:$0xf]
    %v306 = vld [vmem:[#allocation8 + $0x4] sm:$0xf]
    %v307 = vld [vmem:[#allocation8 + $0x8] sm:$0xf]
    %v308 = vld [vmem:[#allocation8 + $0xc] sm:$0xf]
    %v309 = vld [vmem:[#allocation8 + $0x10] sm:$0xf]
    %v310 = vld [vmem:[#allocation8 + $0x14] sm:$0xf]
    %v311 = vld [vmem:[#allocation8 + $0x18] sm:$0xf]
    %v312 = vld [vmem:[#allocation8 + $0x1c] sm:$0xf]
    %v313 = vld [vmem:[#allocation8 + $0x20] sm:$0xf]
    %v314 = vld [vmem:[#allocation8 + $0x24] sm:$0xf]
    %v315 = vld [vmem:[#allocation8 + $0x28] sm:$0xf]
    %v316 = vld [vmem:[#allocation8 + $0x2c] sm:$0xf]
    %v317 = vld [vmem:[#allocation8 + $0x30] sm:$0xf]
    %v318 = vld [vmem:[#allocation8 + $0x34] sm:$0xf]
    %v319 = vld [vmem:[#allocation8 + $0x38] sm:$0xf]
    %v320 = vld [vmem:[#allocation8 + $0x3c] sm:$0xf]
    %v337 = vunpack.c.l.b16 %v305
    %v338 = vunpack.c.l.b16 %v306
    %v339 = vunpack.c.l.b16 %v307
    %v340 = vunpack.c.l.b16 %v308
    %v341 = vunpack.c.l.b16 %v309
    %v342 = vunpack.c.l.b16 %v310
    %v343 = vunpack.c.l.b16 %v311
    %v344 = vunpack.c.l.b16 %v312
    %v345 = vunpack.c.l.b16 %v313
    %v346 = vunpack.c.l.b16 %v314
    %v347 = vunpack.c.l.b16 %v315
    %v348 = vunpack.c.l.b16 %v316
    %v349 = vunpack.c.l.b16 %v317
    %v350 = vunpack.c.l.b16 %v318
    %v351 = vunpack.c.l.b16 %v319
    %v352 = vunpack.c.l.b16 %v320
    %v353 = vpack.c.b16 %v338, %v337
    %v354 = vpack.c.b16 %v340, %v339
    %v355 = vpack.c.b16 %v342, %v341
    %v356 = vpack.c.b16 %v344, %v343
    %v357 = vpack.c.b16 %v346, %v345
    %v358 = vpack.c.b16 %v348, %v347
    %v359 = vpack.c.b16 %v350, %v349
    %v360 = vpack.c.b16 %v352, %v351
    %369 = vmatprep.subr.bf16.mxu0 0
    %370 = vmatpush1.bf16.msra.mxu0 %v360
    %371 = vmatprep.subr.bf16.mxu0 0
    %372 = vmatpush1.bf16.msra.mxu0 %v359
    %373 = vmatprep.subr.bf16.mxu0 0
    %374 = vmatpush1.bf16.msra.mxu0 %v358
    %375 = vmatprep.subr.bf16.mxu0 0
    %376 = vmatpush1.bf16.msra.mxu0 %v357
    %377 = vmatprep.subr.bf16.mxu0 0
    %378 = vmatpush1.bf16.msra.mxu0 %v356
    %379 = vmatprep.subr.bf16.mxu0 0
    %380 = vmatpush1.bf16.msra.mxu0 %v355
    %381 = vmatprep.subr.bf16.mxu0 0
    %382 = vmatpush1.bf16.msra.mxu0 %v354
    %383 = vmatprep.subr.bf16.mxu0 0
    %384 = vmatpush1.bf16.msra.mxu0 %v353
    %385 = vmatprep.subr.bf16.mxu0 0
    %386 = vmatpush2.bf16.msra.mxu0 0
    %387 = vmatprep.subr.bf16.mxu0 0
    %388 = vmatpush2.bf16.msra.mxu0 0
    %389 = vmatprep.subr.bf16.mxu0 0
    %390 = vmatpush2.bf16.msra.mxu0 0
    %391 = vmatprep.subr.bf16.mxu0 0
    %392 = vmatpush2.bf16.msra.mxu0 0
    %393 = vmatprep.subr.bf16.mxu0 0
    %394 = vmatpush2.bf16.msra.mxu0 0
    %395 = vmatprep.subr.bf16.mxu0 0
    %396 = vmatpush2.bf16.msra.mxu0 0
    %397 = vmatprep.subr.bf16.mxu0 0
    %398 = vmatpush2.bf16.msra.mxu0 0
    %399 = vmatprep.subr.bf16.mxu0 0
    %400 = vmatpush2.bf16.msra.mxu0 0
    %401 = vmatprep.mubr.bf16.mxu0 0
    %402 = vmatmul.mubr.bf16.gmra.mxu0 %v304
    %v403 = vpop.f32.mrf.mxu0
    %v404 = vadd.f32 0.0, %v403
    %v405 = vpop.f32.mrf.mxu0
    %v406 = vpop.f32.mrf.mxu0
    %v407 = vpop.f32.mrf.mxu0
    %408 = vdwg.mxu0
    %v409 = vmax.f32 %v404, 0.0
    %v410 = vpack.c.bf16 %v409, %v409
    %v411 = vld [vmem:[#allocation10] sm:$0xf]
    %v412 = vld [vmem:[#allocation10 + $0x4] sm:$0xf]
    %v413 = vld [vmem:[#allocation10 + $0x8] sm:$0xf]
    %v414 = vld [vmem:[#allocation10 + $0xc] sm:$0xf]
    %v415 = vld [vmem:[#allocation10 + $0x10] sm:$0xf]
    %v416 = vld [vmem:[#allocation10 + $0x14] sm:$0xf]
    %v417 = vld [vmem:[#allocation10 + $0x18] sm:$0xf]
    %v418 = vld [vmem:[#allocation10 + $0x1c] sm:$0xf]
    %v419 = vld [vmem:[#allocation10 + $0x20] sm:$0xf]
    %v420 = vld [vmem:[#allocation10 + $0x24] sm:$0xf]
    %v421 = vld [vmem:[#allocation10 + $0x28] sm:$0xf]
    %v422 = vld [vmem:[#allocation10 + $0x2c] sm:$0xf]
    %v423 = vld [vmem:[#allocation10 + $0x30] sm:$0xf]
    %v424 = vld [vmem:[#allocation10 + $0x34] sm:$0xf]
    %v425 = vld [vmem:[#allocation10 + $0x38] sm:$0xf]
    %v426 = vld [vmem:[#allocation10 + $0x3c] sm:$0xf]
    %v443 = vunpack.c.l.b16 %v411
    %v444 = vunpack.c.l.b16 %v412
    %v445 = vunpack.c.l.b16 %v413
    %v446 = vunpack.c.l.b16 %v414
    %v447 = vunpack.c.l.b16 %v415
    %v448 = vunpack.c.l.b16 %v416
    %v449 = vunpack.c.l.b16 %v417
    %v450 = vunpack.c.l.b16 %v418
    %v451 = vunpack.c.l.b16 %v419
    %v452 = vunpack.c.l.b16 %v420
    %v453 = vunpack.c.l.b16 %v421
    %v454 = vunpack.c.l.b16 %v422
    %v455 = vunpack.c.l.b16 %v423
    %v456 = vunpack.c.l.b16 %v424
    %v457 = vunpack.c.l.b16 %v425
    %v458 = vunpack.c.l.b16 %v426
    %v459 = vpack.c.b16 %v444, %v443
    %v460 = vpack.c.b16 %v446, %v445
    %v461 = vpack.c.b16 %v448, %v447
    %v462 = vpack.c.b16 %v450, %v449
    %v463 = vpack.c.b16 %v452, %v451
    %v464 = vpack.c.b16 %v454, %v453
    %v465 = vpack.c.b16 %v456, %v455
    %v466 = vpack.c.b16 %v458, %v457
    %475 = vmatprep.subr.bf16.mxu0 0
    %476 = vmatpush1.bf16.msra.mxu0 %v466
    %477 = vmatprep.subr.bf16.mxu0 0
    %478 = vmatpush1.bf16.msra.mxu0 %v465
    %479 = vmatprep.subr.bf16.mxu0 0
    %480 = vmatpush1.bf16.msra.mxu0 %v464
    %481 = vmatprep.subr.bf16.mxu0 0
    %482 = vmatpush1.bf16.msra.mxu0 %v463
    %483 = vmatprep.subr.bf16.mxu0 0
    %484 = vmatpush1.bf16.msra.mxu0 %v462
    %485 = vmatprep.subr.bf16.mxu0 0
    %486 = vmatpush1.bf16.msra.mxu0 %v461
    %487 = vmatprep.subr.bf16.mxu0 0
    %488 = vmatpush1.bf16.msra.mxu0 %v460
    %489 = vmatprep.subr.bf16.mxu0 0
    %490 = vmatpush1.bf16.msra.mxu0 %v459
    %491 = vmatprep.subr.bf16.mxu0 0
    %492 = vmatpush2.bf16.msra.mxu0 0
    %493 = vmatprep.subr.bf16.mxu0 0
    %494 = vmatpush2.bf16.msra.mxu0 0
    %495 = vmatprep.subr.bf16.mxu0 0
    %496 = vmatpush2.bf16.msra.mxu0 0
    %497 = vmatprep.subr.bf16.mxu0 0
    %498 = vmatpush2.bf16.msra.mxu0 0
    %499 = vmatprep.subr.bf16.mxu0 0
    %500 = vmatpush2.bf16.msra.mxu0 0
    %501 = vmatprep.subr.bf16.mxu0 0
    %502 = vmatpush2.bf16.msra.mxu0 0
    %503 = vmatprep.subr.bf16.mxu0 0
    %504 = vmatpush2.bf16.msra.mxu0 0
    %505 = vmatprep.subr.bf16.mxu0 0
    %506 = vmatpush2.bf16.msra.mxu0 0
    %507 = vmatprep.mubr.bf16.mxu0 0
    %508 = vmatmul.mubr.bf16.gmra.mxu0 %v410
    %v509 = vpop.f32.mrf.mxu0
    %v510 = vadd.f32 0.0, %v509
    %v511 = vpop.f32.mrf.mxu0
    %v512 = vpop.f32.mrf.mxu0
    %v513 = vpop.f32.mrf.mxu0
    %514 = vdwg.mxu0
    %515 = vst [vmem:[%s5] sm:$0xff] %v510
    // Predicated region
    $region42: #{coin_agent_forward.1} parent=1 // pred_check
      _
    $region43: #{coin_agent_forward.1} parent=1 // pred_check_branch
      %517 = sbr.rel (0) target = $region45
    $region44: #{coin_agent_forward.1} parent=1 // pred_region
      _
    $region45: #{coin_agent_forward.1} parent=1 // pred_fallthru
      _
    // Predicated region
    $region46: #{coin_agent_forward.1} parent=1 // pred_check
      _
    $region47: #{coin_agent_forward.1} parent=1 // pred_check_branch
      %519 = sbr.rel (0) target = $region49
    $region48: #{coin_agent_forward.1} parent=1 // pred_region
      _
    $region49: #{coin_agent_forward.1} parent=1 // pred_fallthru
      _
    %520 = vsyncpa [#allocation4], 1
    %521 = vsyncpa [#allocation6], 1
    %522 = vsyncpa [#allocation9], 1

</llo_original>
